<compile_context>
chip_gen: v7x
topology: tpu7x:2x2x1
jax: 0.10.0
libtpu: 0.0.40
codegen_flags: <defaults>
</compile_context>

<pallas_src>
import functools

import jax
import jax.numpy as jnp
from jax.experimental import pallas as pl
from jax.experimental.pallas import tpu as pltpu


# ----------------------------- config ---------------------------------------
CONFIG = {
    "discriminator_dim_in": 32,
    "discriminator_dim_latent": 8,
    "discriminator_dim_out": 16,
    "discriminator_layer_num": 2,
}
BN_EPS = 1e-5
KPAD = 32    # contraction (input-feature) pad: max layer input width, 8-sublane multiple
NPAD = 128   # output-feature pad: one lane group, keeps activations lane-dense


def layer_dims(dim_in, dim_out, layer_num):
    """Per-layer (in, out) dims, exactly as the PyTorch __init__ computes them."""
    dims = []
    for i in range(layer_num):
        d_in = dim_in - (dim_in - dim_out) * i // layer_num
        d_out = dim_in - (dim_in - dim_out) * (i + 1) // layer_num
        dims.append((d_in, d_out))
    return dims


# ----------------------------- kernel ----------------------------------------
def _discriminator_kernel(x_ref, w_ref, vec_ref, out_ref, *, layer_num, dim_latent, eps):
    # x_ref   : (B, dim_in)              f32  (dim_in == KPAD, no wrapper padding)
    # w_ref   : (layer_num+1, KPAD, NPAD) bf16, zero-padded weight blocks (in, out)
    # vec_ref : (2*layer_num+1, NPAD)     f32, rows = [gamma_0, beta_0, ..., b_out]
    # out_ref : (B, dim_latent)           f32
    kpad = w_ref.shape[1]
    h = x_ref[...]  # (B, dim_in) f32

    for i in range(layer_num):
        W = w_ref[i]                                  # (KPAD, NPAD) bf16
        gamma = vec_ref[2 * i: 2 * i + 1, :]          # (1, NPAD) f32
        beta = vec_ref[2 * i + 1: 2 * i + 2, :]       # (1, NPAD) f32

        # Linear (bias dropped: BatchNorm's mean subtraction cancels it exactly).
        # bf16 operands, f32 accumulation on the MXU.
        lhs = h[:, :kpad].astype(jnp.bfloat16)        # (B, KPAD)
        y = jnp.dot(lhs, W, preferred_element_type=jnp.float32)   # (B, NPAD) f32

        # BatchNorm1d, training mode: per-feature batch stats, biased variance.
        # One-pass: var = E[y^2] - mean^2 (f32, no cancellation risk at this scale).
        mean = jnp.mean(y, axis=0, keepdims=True)
        var = jnp.mean(y * y, axis=0, keepdims=True) - mean * mean
        scale = gamma * jax.lax.rsqrt(var + eps)      # (1, NPAD); rsqrt on EUP
        # Pad lanes: y == 0, var == 0, gamma == 0 -> scale == 0 -> h stays 0.

        # normalize + affine + ReLU (one mul + one add on the (B, NPAD) slab)
        h = jnp.maximum((y - mean) * scale + beta, 0.0)

    W_out = w_ref[layer_num]                                      # (KPAD, NPAD) bf16
    b_out = vec_ref[2 * layer_num: 2 * layer_num + 1, :]          # (1, NPAD) f32
    lhs = h[:, :kpad].astype(jnp.bfloat16)
    z = jnp.dot(lhs, W_out, preferred_element_type=jnp.float32) + b_out
    out_ref[...] = jax.nn.sigmoid(z[:, :dim_latent])              # (B, dim_latent)


def discriminator_forward(x, w_slab, vec_slab, *, layer_num, dim_latent):
    """x: (B, dim_in) f32. w_slab: (L+1, KPAD, NPAD) bf16. vec_slab: (2L+1, NPAD) f32."""
    B, d_in = x.shape
    assert d_in == KPAD and d_in % 8 == 0, "dim_in must equal the 8-aligned KPAD"
    assert B % 8 == 0, "BN batch stats assume no sublane-padding rows"

    kernel = functools.partial(
        _discriminator_kernel, layer_num=layer_num, dim_latent=dim_latent, eps=BN_EPS
    )
    return pl.pallas_call(
        kernel,
        out_shape=jax.ShapeDtypeStruct((B, dim_latent), jnp.float32),
        in_specs=[pl.BlockSpec(memory_space=pltpu.MemorySpace.VMEM)] * 3,
        out_specs=pl.BlockSpec(memory_space=pltpu.MemorySpace.VMEM),
    )(x.astype(jnp.float32), w_slab, vec_slab)


# ------------------------- parameter construction ----------------------------
def make_params(key, config):
    """PyTorch-faithful flat params: [W_i, b_i, gamma_i, beta_i]*L + [W_out, b_out].

    W stored pre-transposed as (in, out)."""
    dim_in = config["discriminator_dim_in"]
    dim_latent = config["discriminator_dim_latent"]
    dim_out = config["discriminator_dim_out"]
    layer_num = config["discriminator_layer_num"]

    params = []
    for (d_in, d_out) in layer_dims(dim_in, dim_out, layer_num):
        key, k_w, k_b, k_g, k_be = jax.random.split(key, 5)
        W = jax.random.normal(k_w, (d_in, d_out), jnp.float32) * 0.1
        b = jax.random.normal(k_b, (1, d_out), jnp.float32) * 0.05
        gamma = 1.0 + 0.1 * jax.random.normal(k_g, (1, d_out), jnp.float32)
        beta = 0.05 * jax.random.normal(k_be, (1, d_out), jnp.float32)
        params += [W, b, gamma, beta]

    key, k_wo, k_bo = jax.random.split(key, 3)
    W_out = jax.random.normal(k_wo, (dim_out, dim_latent), jnp.float32) * 0.1
    b_out = jax.random.normal(k_bo, (1, dim_latent), jnp.float32) * 0.05
    params += [W_out, b_out]
    return params


def pack_params(params, *, layer_num, kpad=KPAD, npad=NPAD):
    """Pack params into two slabs: (L+1, kpad, npad) bf16 weights and
    (2L+1, npad) f32 vectors. Pre-BN Linear biases are dropped (mathematically
    cancelled by BatchNorm's mean subtraction)."""
    w_blocks = []
    vec_rows = []
    idx = 0
    for _ in range(layer_num):
        W, _b, gamma, beta = params[idx:idx + 4]
        idx += 4
        d_in, d_out = W.shape
        w_blocks.append(jnp.zeros((kpad, npad), jnp.float32).at[:d_in, :d_out].set(W))
        vec_rows.append(jnp.zeros((npad,), jnp.float32).at[:d_out].set(gamma.reshape(-1)))
        vec_rows.append(jnp.zeros((npad,), jnp.float32).at[:d_out].set(beta.reshape(-1)))

    W_out, b_out = params[idx], params[idx + 1]
    d_in, d_lat = W_out.shape
    w_blocks.append(jnp.zeros((kpad, npad), jnp.float32).at[:d_in, :d_lat].set(W_out))
    vec_rows.append(jnp.zeros((npad,), jnp.float32).at[:d_lat].set(b_out.reshape(-1)))

    w_slab = jnp.stack(w_blocks).astype(jnp.bfloat16)   # (L+1, kpad, npad) bf16
    vec_slab = jnp.stack(vec_rows)                      # (2L+1, npad) f32
    return w_slab, vec_slab


# --------------------------- pure-JAX reference -------------------------------
def reference_forward(x, params, *, layer_num):
    """Faithful f32 reference (includes the Linear biases that BN cancels)."""
    h = x.astype(jnp.float32)
    idx = 0
    for _ in range(layer_num):
        W, b, gamma, beta = params[idx:idx + 4]
        idx += 4
        y = h @ W + b
        mean = jnp.mean(y, axis=0, keepdims=True)
        var = jnp.mean((y - mean) ** 2, axis=0, keepdims=True)
        h = jnp.maximum((y - mean) / jnp.sqrt(var + BN_EPS) * gamma + beta, 0.0)
    W_out, b_out = params[idx], params[idx + 1]
    return jax.nn.sigmoid(h @ W_out + b_out)


# ---------------------------------- main --------------------------------------
if __name__ == "__main__":
    key = jax.random.PRNGKey(0)
    key, k_x, k_p = jax.random.split(key, 3)

    B = 128  # multiple of 8 sublanes; realistic minibatch for MXU occupancy
    dim_in = CONFIG["discriminator_dim_in"]
    dim_latent = CONFIG["discriminator_dim_latent"]
    layer_num = CONFIG["discriminator_layer_num"]

    x = jax.random.normal(k_x, (B, dim_in), jnp.float32)
    params = make_params(k_p, CONFIG)
    w_slab, vec_slab = pack_params(params, layer_num=layer_num)

    label = discriminator_forward(
        x, w_slab, vec_slab, layer_num=layer_num, dim_latent=dim_latent
    )
    label = jax.block_until_ready(label)

    ref = reference_forward(x, params, layer_num=layer_num)
    assert label.shape == (B, dim_latent)
    # bf16 matmul inputs (per perf review) -> loosened tolerance vs. f32 reference;
    # BN re-normalizes each layer so the post-sigmoid error stays ~1e-3.
    assert jnp.allclose(label, ref, atol=2e-2, rtol=0.0), "mismatch vs reference"

    print("KERNEL_OK")
</pallas_src>

<mosaic_0001>
module attributes {stable_mosaic.version = 11 : i64} {
  func.func @_discriminator_kernel(%arg0: memref<128x32xf32, #tpu.memory_space<vmem>>, %arg1: memref<3x32x128xbf16, #tpu.memory_space<vmem>>, %arg2: memref<5x128xf32, #tpu.memory_space<vmem>>, %arg3: memref<128x8xf32, #tpu.memory_space<vmem>>) attributes {dimension_semantics = [], scalar_prefetch = 0 : i64, scratch_operands = 0 : i64, tpu.core_type = #tpu.core_type<tc>} {
    %c0 = arith.constant 0 : index
    %c0_0 = arith.constant 0 : index
    %0 = vector.load %arg0[%c0, %c0_0] : memref<128x32xf32, #tpu.memory_space<vmem>>, vector<128x32xf32>
    %c0_1 = arith.constant 0 : index
    %c0_2 = arith.constant 0 : index
    %c0_3 = arith.constant 0 : index
    %1 = vector.load %arg1[%c0_1, %c0_2, %c0_3] : memref<3x32x128xbf16, #tpu.memory_space<vmem>>, vector<1x32x128xbf16>
    %2 = vector.shape_cast %1 : vector<1x32x128xbf16> to vector<32x128xbf16>
    %c0_4 = arith.constant 0 : index
    %c0_5 = arith.constant 0 : index
    %3 = vector.load %arg2[%c0_4, %c0_5] : memref<5x128xf32, #tpu.memory_space<vmem>>, vector<1x128xf32>
    %c1 = arith.constant 1 : index
    %c0_6 = arith.constant 0 : index
    %4 = vector.load %arg2[%c1, %c0_6] : memref<5x128xf32, #tpu.memory_space<vmem>>, vector<1x128xf32>
    %5 = arith.truncf %0 : vector<128x32xf32> to vector<128x32xbf16>
    %cst = arith.constant dense<0.000000e+00> : vector<128x128xf32>
    %6 = tpu.matmul %5, %2, %cst {dimension_numbers = #tpu.dot_dimension_numbers<[1], [0], [0], [1], [0, 0, 1, 1], [], []>} : vector<128x32xbf16>, vector<32x128xbf16>, vector<128x128xf32> -> vector<128x128xf32>
    %cst_7 = arith.constant dense<0.000000e+00> : vector<128xf32>
    %7 = vector.multi_reduction <add>, %6, %cst_7 [0] : vector<128x128xf32> to vector<128xf32>
    %8 = vector.shape_cast %7 : vector<128xf32> to vector<1x128xf32>
    %cst_8 = arith.constant 1.280000e+02 : f32
    %9 = vector.broadcast %cst_8 : f32 to vector<1x128xf32>
    %10 = arith.divf %8, %9 : vector<1x128xf32>
    %11 = arith.mulf %6, %6 : vector<128x128xf32>
    %cst_9 = arith.constant dense<0.000000e+00> : vector<128xf32>
    %12 = vector.multi_reduction <add>, %11, %cst_9 [0] : vector<128x128xf32> to vector<128xf32>
    %13 = vector.shape_cast %12 : vector<128xf32> to vector<1x128xf32>
    %cst_10 = arith.constant 1.280000e+02 : f32
    %14 = vector.broadcast %cst_10 : f32 to vector<1x128xf32>
    %15 = arith.divf %13, %14 : vector<1x128xf32>
    %16 = arith.mulf %10, %10 : vector<1x128xf32>
    %17 = arith.subf %15, %16 : vector<1x128xf32>
    %cst_11 = arith.constant 9.99999974E-6 : f32
    %18 = vector.broadcast %cst_11 : f32 to vector<1x128xf32>
    %19 = arith.addf %17, %18 : vector<1x128xf32>
    %20 = math.rsqrt %19 : vector<1x128xf32>
    %21 = arith.mulf %3, %20 : vector<1x128xf32>
    %22 = vector.broadcast %10 : vector<1x128xf32> to vector<128x128xf32>
    %23 = arith.subf %6, %22 : vector<128x128xf32>
    %24 = vector.broadcast %21 : vector<1x128xf32> to vector<128x128xf32>
    %25 = arith.mulf %23, %24 : vector<128x128xf32>
    %26 = vector.broadcast %4 : vector<1x128xf32> to vector<128x128xf32>
    %27 = arith.addf %25, %26 : vector<128x128xf32>
    %cst_12 = arith.constant 0.000000e+00 : f32
    %28 = vector.broadcast %cst_12 : f32 to vector<128x128xf32>
    %29 = arith.maximumf %27, %28 : vector<128x128xf32>
    %c1_13 = arith.constant 1 : index
    %c0_14 = arith.constant 0 : index
    %c0_15 = arith.constant 0 : index
    %30 = vector.load %arg1[%c1_13, %c0_14, %c0_15] : memref<3x32x128xbf16, #tpu.memory_space<vmem>>, vector<1x32x128xbf16>
    %31 = vector.shape_cast %30 : vector<1x32x128xbf16> to vector<32x128xbf16>
    %c2 = arith.constant 2 : index
    %c0_16 = arith.constant 0 : index
    %32 = vector.load %arg2[%c2, %c0_16] : memref<5x128xf32, #tpu.memory_space<vmem>>, vector<1x128xf32>
    %c3 = arith.constant 3 : index
    %c0_17 = arith.constant 0 : index
    %33 = vector.load %arg2[%c3, %c0_17] : memref<5x128xf32, #tpu.memory_space<vmem>>, vector<1x128xf32>
    %34 = vector.extract_strided_slice %29 {offsets = [0, 0], sizes = [128, 32], strides = [1, 1]} : vector<128x128xf32> to vector<128x32xf32>
    %35 = arith.truncf %34 : vector<128x32xf32> to vector<128x32xbf16>
    %cst_18 = arith.constant dense<0.000000e+00> : vector<128x128xf32>
    %36 = tpu.matmul %35, %31, %cst_18 {dimension_numbers = #tpu.dot_dimension_numbers<[1], [0], [0], [1], [0, 0, 1, 1], [], []>} : vector<128x32xbf16>, vector<32x128xbf16>, vector<128x128xf32> -> vector<128x128xf32>
    %cst_19 = arith.constant dense<0.000000e+00> : vector<128xf32>
    %37 = vector.multi_reduction <add>, %36, %cst_19 [0] : vector<128x128xf32> to vector<128xf32>
    %38 = vector.shape_cast %37 : vector<128xf32> to vector<1x128xf32>
    %cst_20 = arith.constant 1.280000e+02 : f32
    %39 = vector.broadcast %cst_20 : f32 to vector<1x128xf32>
    %40 = arith.divf %38, %39 : vector<1x128xf32>
    %41 = arith.mulf %36, %36 : vector<128x128xf32>
    %cst_21 = arith.constant dense<0.000000e+00> : vector<128xf32>
    %42 = vector.multi_reduction <add>, %41, %cst_21 [0] : vector<128x128xf32> to vector<128xf32>
    %43 = vector.shape_cast %42 : vector<128xf32> to vector<1x128xf32>
    %cst_22 = arith.constant 1.280000e+02 : f32
    %44 = vector.broadcast %cst_22 : f32 to vector<1x128xf32>
    %45 = arith.divf %43, %44 : vector<1x128xf32>
    %46 = arith.mulf %40, %40 : vector<1x128xf32>
    %47 = arith.subf %45, %46 : vector<1x128xf32>
    %cst_23 = arith.constant 9.99999974E-6 : f32
    %48 = vector.broadcast %cst_23 : f32 to vector<1x128xf32>
    %49 = arith.addf %47, %48 : vector<1x128xf32>
    %50 = math.rsqrt %49 : vector<1x128xf32>
    %51 = arith.mulf %32, %50 : vector<1x128xf32>
    %52 = vector.broadcast %40 : vector<1x128xf32> to vector<128x128xf32>
    %53 = arith.subf %36, %52 : vector<128x128xf32>
    %54 = vector.broadcast %51 : vector<1x128xf32> to vector<128x128xf32>
    %55 = arith.mulf %53, %54 : vector<128x128xf32>
    %56 = vector.broadcast %33 : vector<1x128xf32> to vector<128x128xf32>
    %57 = arith.addf %55, %56 : vector<128x128xf32>
    %cst_24 = arith.constant 0.000000e+00 : f32
    %58 = vector.broadcast %cst_24 : f32 to vector<128x128xf32>
    %59 = arith.maximumf %57, %58 : vector<128x128xf32>
    %c2_25 = arith.constant 2 : index
    %c0_26 = arith.constant 0 : index
    %c0_27 = arith.constant 0 : index
    %60 = vector.load %arg1[%c2_25, %c0_26, %c0_27] : memref<3x32x128xbf16, #tpu.memory_space<vmem>>, vector<1x32x128xbf16>
    %61 = vector.shape_cast %60 : vector<1x32x128xbf16> to vector<32x128xbf16>
    %c4 = arith.constant 4 : index
    %c0_28 = arith.constant 0 : index
    %62 = vector.load %arg2[%c4, %c0_28] : memref<5x128xf32, #tpu.memory_space<vmem>>, vector<1x128xf32>
    %63 = vector.extract_strided_slice %59 {offsets = [0, 0], sizes = [128, 32], strides = [1, 1]} : vector<128x128xf32> to vector<128x32xf32>
    %64 = arith.truncf %63 : vector<128x32xf32> to vector<128x32xbf16>
    %cst_29 = arith.constant dense<0.000000e+00> : vector<128x128xf32>
    %65 = tpu.matmul %64, %61, %cst_29 {dimension_numbers = #tpu.dot_dimension_numbers<[1], [0], [0], [1], [0, 0, 1, 1], [], []>} : vector<128x32xbf16>, vector<32x128xbf16>, vector<128x128xf32> -> vector<128x128xf32>
    %66 = vector.broadcast %62 : vector<1x128xf32> to vector<128x128xf32>
    %67 = arith.addf %65, %66 : vector<128x128xf32>
    %68 = vector.extract_strided_slice %67 {offsets = [0, 0], sizes = [128, 8], strides = [1, 1]} : vector<128x128xf32> to vector<128x8xf32>
    %69 = arith.negf %68 : vector<128x8xf32>
    %70 = math.exp %69 : vector<128x8xf32>
    %cst_30 = arith.constant 1.000000e+00 : f32
    %71 = vector.broadcast %cst_30 : f32 to vector<128x8xf32>
    %72 = arith.addf %71, %70 : vector<128x8xf32>
    %73 = arith.divf %71, %72 : vector<128x8xf32>
    %c0_31 = arith.constant 0 : index
    %c0_32 = arith.constant 0 : index
    %74 = vector.load %arg3[%c0_31, %c0_32] : memref<128x8xf32, #tpu.memory_space<vmem>>, vector<128x8xf32>
    tpu.vector_store %arg3[%c0_31, %c0_32], %73 {strides = array<i32>} : memref<128x8xf32, #tpu.memory_space<vmem>>, vector<128x8xf32>,
    return
  }
}

</mosaic_0001>

<llo_original>
// kernel: tpu_custom_call.1
$region0: #{tpu_custom_call.1}
  #allocation0 [shape = 'u32[]', space=smem, size = 0x4, offset = 0x4, fixed_abs, tag = 'smem constant byte address 0x4 - core index']
  #allocation1 [shape = 'u32[144,128]{1,0:T(1,128)}', space=vmem, size = 0x12000, scoped, tag = 'internal scratch']
  %s0 = inlined_call_operand.vmem [shape: f32[128,32], index: 0, kind: input, shape index: {}]
  %s1 = inlined_call_operand.vmem [shape: bf16[3,32,128], index: 1, kind: input, shape index: {}]
  %s2 = inlined_call_operand.vmem [shape: f32[5,128], index: 2, kind: input, shape index: {}]
  %s3 = inlined_call_operand.vmem [shape: f32[128,8], index: 3, kind: output, shape index: {}]
  %s4 = sld [smem:[#allocation0]]
  $region22: #{tpu_custom_call.1} parent=0
    _
  %s6 = ssub.s32 1, %s4
  %s7 = scalar_select 0, %s6, %s4
  // Predicated region
  $region2: #{tpu_custom_call.1} parent=0 // pred_check
    _
  $region3: #{tpu_custom_call.1} parent=0 // pred_check_branch
    %9 = sbr.rel (0) target = $region5
  $region4: #{tpu_custom_call.1} parent=0 // pred_region
    _
  $region5: #{tpu_custom_call.1} parent=0 // pred_fallthru
    _
  // Predicated region
  $region6: #{tpu_custom_call.1} parent=0 // pred_check
    _
  $region7: #{tpu_custom_call.1} parent=0 // pred_check_branch
    %11 = sbr.rel (0) target = $region9
  $region8: #{tpu_custom_call.1} parent=0 // pred_region
    _
  $region9: #{tpu_custom_call.1} parent=0 // pred_fallthru
    _
  // Predicated region
  $region10: #{tpu_custom_call.1} parent=0 // pred_check
    _
  $region11: #{tpu_custom_call.1} parent=0 // pred_check_branch
    %13 = sbr.rel (0) target = $region13
  $region12: #{tpu_custom_call.1} parent=0 // pred_region
    _
  $region13: #{tpu_custom_call.1} parent=0 // pred_fallthru
    _
  %v15 = vld [vmem:[%s0] sm:$0xff]
  %v16 = vld [vmem:[%s0 + $0x8] sm:$0xff]
  %v17 = vld [vmem:[%s0 + $0x10] sm:$0xff]
  %v18 = vld [vmem:[%s0 + $0x18] sm:$0xff]
  %v19 = vld [vmem:[%s0 + $0x20] sm:$0xff]
  %v20 = vld [vmem:[%s0 + $0x28] sm:$0xff]
  %v21 = vld [vmem:[%s0 + $0x30] sm:$0xff]
  %v22 = vld [vmem:[%s0 + $0x38] sm:$0xff]
  %v23 = vld [vmem:[%s0 + $0x40] sm:$0xff]
  %v24 = vld [vmem:[%s0 + $0x48] sm:$0xff]
  %v25 = vld [vmem:[%s0 + $0x50] sm:$0xff]
  %v26 = vld [vmem:[%s0 + $0x58] sm:$0xff]
  %v27 = vld [vmem:[%s0 + $0x60] sm:$0xff]
  %v28 = vld [vmem:[%s0 + $0x68] sm:$0xff]
  %v29 = vld [vmem:[%s0 + $0x70] sm:$0xff]
  %v30 = vld [vmem:[%s0 + $0x78] sm:$0xff]
  %v31 = vld [vmem:[%s1] sm:$0xf]
  %v32 = vld [vmem:[%s1 + $0x4] sm:$0xf]
  %v33 = vld [vmem:[%s1 + $0x8] sm:$0xf]
  %v34 = vld [vmem:[%s1 + $0xc] sm:$0xf]
  %v35 = vld [vmem:[%s2] sm:$0x1]
  %v36 = vld [vmem:[%s2 + $0x1] sm:$0x1]
  %v37 = vpack.c.bf16 %v16, %v15
  %v38 = vpack.c.bf16 %v18, %v17
  %v39 = vpack.c.bf16 %v20, %v19
  %v40 = vpack.c.bf16 %v22, %v21
  %v41 = vpack.c.bf16 %v24, %v23
  %v42 = vpack.c.bf16 %v26, %v25
  %v43 = vpack.c.bf16 %v28, %v27
  %v44 = vpack.c.bf16 %v30, %v29
  %v49 = vunpack.c.l.b16 %v31
  %v50 = vunpack.c.l.b16 %v32
  %v51 = vunpack.c.l.b16 %v33
  %v52 = vunpack.c.l.b16 %v34
  %v53 = vpack.c.b16 %v50, %v49
  %v54 = vpack.c.b16 %v52, %v51
  %vm57 = vcmask 261120
  %v59 = vsel %vm57, %v37, 0
  %v62 = vsel %vm57, %v38, 0
  %v65 = vsel %vm57, %v39, 0
  %v68 = vsel %vm57, %v40, 0
  %v71 = vsel %vm57, %v41, 0
  %v74 = vsel %vm57, %v42, 0
  %v77 = vsel %vm57, %v43, 0
  %v80 = vsel %vm57, %v44, 0
  %82 = vmatprep.subr.bf16.mxu0 0
  %83 = vmatpush1.bf16.msra.mxu0 %v53
  %84 = vmatprep.subr.bf16.mxu0 0
  %85 = vmatpush1.bf16.msra.mxu0 %v54
  %86 = vmatprep.subr.bf16.mxu0 0
  %87 = vmatpush1.bf16.msra.mxu0 0
  %88 = vmatprep.subr.bf16.mxu0 0
  %89 = vmatpush1.bf16.msra.mxu0 0
  %90 = vmatprep.subr.bf16.mxu0 0
  %91 = vmatpush1.bf16.msra.mxu0 0
  %92 = vmatprep.subr.bf16.mxu0 0
  %93 = vmatpush1.bf16.msra.mxu0 0
  %94 = vmatprep.subr.bf16.mxu0 0
  %95 = vmatpush1.bf16.msra.mxu0 0
  %96 = vmatprep.subr.bf16.mxu0 0
  %97 = vmatpush1.bf16.msra.mxu0 0
  %98 = vmatprep.subr.bf16.mxu0 0
  %99 = vmatpush1.bf16.msra.mxu0 0
  %100 = vmatprep.subr.bf16.mxu0 0
  %101 = vmatpush1.bf16.msra.mxu0 0
  %102 = vmatprep.subr.bf16.mxu0 0
  %103 = vmatpush1.bf16.msra.mxu0 0
  %104 = vmatprep.subr.bf16.mxu0 0
  %105 = vmatpush1.bf16.msra.mxu0 0
  %106 = vmatprep.subr.bf16.mxu0 0
  %107 = vmatpush1.bf16.msra.mxu0 0
  %108 = vmatprep.subr.bf16.mxu0 0
  %109 = vmatpush1.bf16.msra.mxu0 0
  %110 = vmatprep.subr.bf16.mxu0 0
  %111 = vmatpush1.bf16.msra.mxu0 0
  %112 = vmatprep.subr.bf16.mxu0 0
  %113 = vmatpush1.bf16.msra.mxu0 0
  %114 = vmatprep.mubr.bf16.mxu0 0
  %115 = vmatmul.mubr.bf16.gmra.mrb[0].mxu0 %v59
  %v116 = vpop.f32.mrb[0].mxu0
  %v117 = vadd.f32 0.0, %v116
  %v118 = vpop.f32.mrb[0].mxu0
  %v119 = vpop.f32.mrb[0].mxu0
  %v120 = vadd.f32 0.0, %v119
  %v121 = vpop.f32.mrb[0].mxu0
  %122 = vmatprep.mubr.bf16.mxu0 0
  %123 = vmatmul.mubr.bf16.gmra.mrb[0].mxu0 %v62
  %v124 = vpop.f32.mrb[0].mxu0
  %v125 = vadd.f32 0.0, %v124
  %v126 = vpop.f32.mrb[0].mxu0
  %v127 = vpop.f32.mrb[0].mxu0
  %v128 = vadd.f32 0.0, %v127
  %v129 = vpop.f32.mrb[0].mxu0
  %130 = vmatprep.mubr.bf16.mxu0 0
  %131 = vmatmul.mubr.bf16.gmra.mrb[0].mxu0 %v65
  %v132 = vpop.f32.mrb[0].mxu0
  %v133 = vadd.f32 0.0, %v132
  %v134 = vpop.f32.mrb[0].mxu0
  %v135 = vpop.f32.mrb[0].mxu0
  %v136 = vadd.f32 0.0, %v135
  %v137 = vpop.f32.mrb[0].mxu0
  %138 = vmatprep.mubr.bf16.mxu0 0
  %139 = vmatmul.mubr.bf16.gmra.mrb[0].mxu0 %v68
  %v140 = vpop.f32.mrb[0].mxu0
  %v141 = vadd.f32 0.0, %v140
  %v142 = vpop.f32.mrb[0].mxu0
  %v143 = vpop.f32.mrb[0].mxu0
  %v144 = vadd.f32 0.0, %v143
  %v145 = vpop.f32.mrb[0].mxu0
  %146 = vmatprep.mubr.bf16.mxu0 0
  %147 = vmatmul.mubr.bf16.gmra.mrb[0].mxu0 %v71
  %v148 = vpop.f32.mrb[0].mxu0
  %v149 = vadd.f32 0.0, %v148
  %v150 = vpop.f32.mrb[0].mxu0
  %v151 = vpop.f32.mrb[0].mxu0
  %v152 = vadd.f32 0.0, %v151
  %v153 = vpop.f32.mrb[0].mxu0
  %154 = vmatprep.mubr.bf16.mxu0 0
  %155 = vmatmul.mubr.bf16.gmra.mrb[0].mxu0 %v74
  %v156 = vpop.f32.mrb[0].mxu0
  %v157 = vadd.f32 0.0, %v156
  %v158 = vpop.f32.mrb[0].mxu0
  %v159 = vpop.f32.mrb[0].mxu0
  %v160 = vadd.f32 0.0, %v159
  %v161 = vpop.f32.mrb[0].mxu0
  %162 = vmatprep.mubr.bf16.mxu0 0
  %163 = vmatmul.mubr.bf16.gmra.mrb[0].mxu0 %v77
  %v164 = vpop.f32.mrb[0].mxu0
  %v165 = vadd.f32 0.0, %v164
  %v166 = vpop.f32.mrb[0].mxu0
  %v167 = vpop.f32.mrb[0].mxu0
  %v168 = vadd.f32 0.0, %v167
  %v169 = vpop.f32.mrb[0].mxu0
  %170 = vmatprep.mubr.bf16.mxu0 0
  %171 = vmatmul.mubr.bf16.gmra.mrb[0].mxu0 %v80
  %v172 = vpop.f32.mrb[0].mxu0
  %v173 = vadd.f32 0.0, %v172
  %v174 = vpop.f32.mrb[0].mxu0
  %v175 = vpop.f32.mrb[0].mxu0
  %v176 = vadd.f32 0.0, %v175
  %v177 = vpop.f32.mrb[0].mxu0
  %178 = vdwg.mxu0
  %v179 = vadd.f32 %v117, %v120
  %v180 = vadd.f32 %v179, %v125
  %v181 = vadd.f32 %v180, %v128
  %v182 = vadd.f32 %v181, %v133
  %v183 = vadd.f32 %v182, %v136
  %v184 = vadd.f32 %v183, %v141
  %v185 = vadd.f32 %v184, %v144
  %v186 = vadd.f32 %v185, %v149
  %v187 = vadd.f32 %v186, %v152
  %v188 = vadd.f32 %v187, %v157
  %v189 = vadd.f32 %v188, %v160
  %v190 = vadd.f32 %v189, %v165
  %v191 = vadd.f32 %v190, %v168
  %v192 = vadd.f32 %v191, %v173
  %v193 = vadd.f32 %v192, %v176
  %v194 = vrot.slane %v193, 4
  %v195 = vadd.f32 %v193, %v194
  %v196 = vrot.slane %v195, 2
  %v197 = vadd.f32 %v195, %v196
  %v198 = vrot.slane %v197, 1
  %v199 = vadd.f32 %v197, %v198
  %v200 = vrcp.pop 128.0
  %v201 = vmul.f32 %v199, %v200
  %v202 = vmul.f32 %v117, %v117
  %v203 = vmul.f32 %v120, %v120
  %v204 = vmul.f32 %v125, %v125
  %v205 = vmul.f32 %v128, %v128
  %v206 = vmul.f32 %v133, %v133
  %v207 = vmul.f32 %v136, %v136
  %v208 = vmul.f32 %v141, %v141
  %v209 = vmul.f32 %v144, %v144
  %v210 = vmul.f32 %v149, %v149
  %v211 = vmul.f32 %v152, %v152
  %v212 = vmul.f32 %v157, %v157
  %v213 = vmul.f32 %v160, %v160
  %v214 = vmul.f32 %v165, %v165
  %v215 = vmul.f32 %v168, %v168
  %v216 = vmul.f32 %v173, %v173
  %v217 = vmul.f32 %v176, %v176
  %v218 = vadd.f32 %v202, %v203
  %v219 = vadd.f32 %v218, %v204
  %v220 = vadd.f32 %v219, %v205
  %v221 = vadd.f32 %v220, %v206
  %v222 = vadd.f32 %v221, %v207
  %v223 = vadd.f32 %v222, %v208
  %v224 = vadd.f32 %v223, %v209
  %v225 = vadd.f32 %v224, %v210
  %v226 = vadd.f32 %v225, %v211
  %v227 = vadd.f32 %v226, %v212
  %v228 = vadd.f32 %v227, %v213
  %v229 = vadd.f32 %v228, %v214
  %v230 = vadd.f32 %v229, %v215
  %v231 = vadd.f32 %v230, %v216
  %v232 = vadd.f32 %v231, %v217
  %v233 = vrot.slane %v232, 4
  %v234 = vadd.f32 %v232, %v233
  %v235 = vrot.slane %v234, 2
  %v236 = vadd.f32 %v234, %v235
  %v237 = vrot.slane %v236, 1
  %v238 = vadd.f32 %v236, %v237
  %v239 = vmul.f32 %v238, %v200
  %v240 = vmul.f32 %v201, %v201
  %v241 = vsub.f32 %v239, %v240
  %v242 = vadd.f32 %v241, 1e-05
  %v243 = vrsqrt.pop %v242
  %v244 = vmul.f32 %v35, %v243
  %v245 = vsub.f32 %v117, %v201
  %v246 = vsub.f32 %v120, %v201
  %v247 = vsub.f32 %v125, %v201
  %v248 = vsub.f32 %v128, %v201
  %v249 = vsub.f32 %v133, %v201
  %v250 = vsub.f32 %v136, %v201
  %v251 = vsub.f32 %v141, %v201
  %v252 = vsub.f32 %v144, %v201
  %v253 = vsub.f32 %v149, %v201
  %v254 = vsub.f32 %v152, %v201
  %v255 = vsub.f32 %v157, %v201
  %v256 = vsub.f32 %v160, %v201
  %v257 = vsub.f32 %v165, %v201
  %v258 = vsub.f32 %v168, %v201
  %v259 = vsub.f32 %v173, %v201
  %v260 = vsub.f32 %v176, %v201
  %v261 = vlaneseq
  %v262 = vshrl.u32 %v261, 7
  %v263 = vsub.s32 0, %v262
  %v264 = vrot.slane %v244, %v263
  %v265 = vmul.f32 %v245, %v264
  %v266 = vmul.f32 %v246, %v264
  %v267 = vmul.f32 %v247, %v264
  %v268 = vmul.f32 %v248, %v264
  %v269 = vmul.f32 %v249, %v264
  %v270 = vmul.f32 %v250, %v264
  %v271 = vmul.f32 %v251, %v264
  %v272 = vmul.f32 %v252, %v264
  %v273 = vmul.f32 %v253, %v264
  %v274 = vmul.f32 %v254, %v264
  %v275 = vmul.f32 %v255, %v264
  %v276 = vmul.f32 %v256, %v264
  %v277 = vmul.f32 %v257, %v264
  %v278 = vmul.f32 %v258, %v264
  %v279 = vmul.f32 %v259, %v264
  %v280 = vmul.f32 %v260, %v264
  %v281 = vlaneseq
  %v282 = vshrl.u32 %v281, 7
  %v283 = vsub.s32 0, %v282
  %v284 = vrot.slane %v36, %v283
  %v285 = vadd.f32 %v265, %v284
  %v286 = vadd.f32 %v266, %v284
  %v287 = vadd.f32 %v267, %v284
  %v288 = vadd.f32 %v268, %v284
  %v289 = vadd.f32 %v269, %v284
  %v290 = vadd.f32 %v270, %v284
  %v291 = vadd.f32 %v271, %v284
  %v292 = vadd.f32 %v272, %v284
  %v293 = vadd.f32 %v273, %v284
  %v294 = vadd.f32 %v274, %v284
  %v295 = vadd.f32 %v275, %v284
  %v296 = vadd.f32 %v276, %v284
  %v297 = vadd.f32 %v277, %v284
  %v298 = vadd.f32 %v278, %v284
  %v299 = vadd.f32 %v279, %v284
  %v300 = vadd.f32 %v280, %v284
  %v301 = vmax.f32 %v285, 0.0
  %v302 = vmax.f32 %v286, 0.0
  %v303 = vmax.f32 %v287, 0.0
  %v304 = vmax.f32 %v288, 0.0
  %v305 = vmax.f32 %v289, 0.0
  %v306 = vmax.f32 %v290, 0.0
  %v307 = vmax.f32 %v291, 0.0
  %v308 = vmax.f32 %v292, 0.0
  %v309 = vmax.f32 %v293, 0.0
  %v310 = vmax.f32 %v294, 0.0
  %v311 = vmax.f32 %v295, 0.0
  %v312 = vmax.f32 %v296, 0.0
  %v313 = vmax.f32 %v297, 0.0
  %v314 = vmax.f32 %v298, 0.0
  %v315 = vmax.f32 %v299, 0.0
  %v316 = vmax.f32 %v300, 0.0
  %s317 = scalar_lea.vmem %s1, 16
  %v318 = vld [vmem:[%s317] sm:$0xf]
  %v319 = vld [vmem:[%s317 + $0x4] sm:$0xf]
  %v320 = vld [vmem:[%s317 + $0x8] sm:$0xf]
  %v321 = vld [vmem:[%s317 + $0xc] sm:$0xf]
  %v322 = vld [vmem:[%s2 + $0x2] sm:$0x1]
  %v323 = vld [vmem:[%s2 + $0x3] sm:$0x1]
  %v324 = vpack.c.bf16 %v302, %v301
  %v325 = vpack.c.bf16 %v304, %v303
  %v326 = vpack.c.bf16 %v306, %v305
  %v327 = vpack.c.bf16 %v308, %v307
  %v328 = vpack.c.bf16 %v310, %v309
  %v329 = vpack.c.bf16 %v312, %v311
  %v330 = vpack.c.bf16 %v314, %v313
  %v331 = vpack.c.bf16 %v316, %v315
  %v336 = vunpack.c.l.b16 %v318
  %v337 = vunpack.c.l.b16 %v319
  %v338 = vunpack.c.l.b16 %v320
  %v339 = vunpack.c.l.b16 %v321
  %v340 = vpack.c.b16 %v337, %v336
  %v341 = vpack.c.b16 %v339, %v338
  %v345 = vsel %vm57, %v324, 0
  %v348 = vsel %vm57, %v325, 0
  %v351 = vsel %vm57, %v326, 0
  %v354 = vsel %vm57, %v327, 0
  %v357 = vsel %vm57, %v328, 0
  %v360 = vsel %vm57, %v329, 0
  %v363 = vsel %vm57, %v330, 0
  %v366 = vsel %vm57, %v331, 0
  %368 = vmatprep.subr.bf16.mxu0 0
  %369 = vmatpush1.bf16.msra.mxu0 %v340
  %370 = vmatprep.subr.bf16.mxu0 0
  %371 = vmatpush1.bf16.msra.mxu0 %v341
  %372 = vmatprep.subr.bf16.mxu0 0
  %373 = vmatpush1.bf16.msra.mxu0 0
  %374 = vmatprep.subr.bf16.mxu0 0
  %375 = vmatpush1.bf16.msra.mxu0 0
  %376 = vmatprep.subr.bf16.mxu0 0
  %377 = vmatpush1.bf16.msra.mxu0 0
  %378 = vmatprep.subr.bf16.mxu0 0
  %379 = vmatpush1.bf16.msra.mxu0 0
  %380 = vmatprep.subr.bf16.mxu0 0
  %381 = vmatpush1.bf16.msra.mxu0 0
  %382 = vmatprep.subr.bf16.mxu0 0
  %383 = vmatpush1.bf16.msra.mxu0 0
  %384 = vmatprep.subr.bf16.mxu0 0
  %385 = vmatpush1.bf16.msra.mxu0 0
  %386 = vmatprep.subr.bf16.mxu0 0
  %387 = vmatpush1.bf16.msra.mxu0 0
  %388 = vmatprep.subr.bf16.mxu0 0
  %389 = vmatpush1.bf16.msra.mxu0 0
  %390 = vmatprep.subr.bf16.mxu0 0
  %391 = vmatpush1.bf16.msra.mxu0 0
  %392 = vmatprep.subr.bf16.mxu0 0
  %393 = vmatpush1.bf16.msra.mxu0 0
  %394 = vmatprep.subr.bf16.mxu0 0
  %395 = vmatpush1.bf16.msra.mxu0 0
  %396 = vmatprep.subr.bf16.mxu0 0
  %397 = vmatpush1.bf16.msra.mxu0 0
  %398 = vmatprep.subr.bf16.mxu0 0
  %399 = vmatpush1.bf16.msra.mxu0 0
  %400 = vmatprep.mubr.bf16.mxu0 0
  %401 = vmatmul.mubr.bf16.gmra.mrb[0].mxu0 %v345
  %v402 = vpop.f32.mrb[0].mxu0
  %v403 = vadd.f32 0.0, %v402
  %v404 = vpop.f32.mrb[0].mxu0
  %v405 = vpop.f32.mrb[0].mxu0
  %v406 = vadd.f32 0.0, %v405
  %v407 = vpop.f32.mrb[0].mxu0
  %408 = vmatprep.mubr.bf16.mxu0 0
  %409 = vmatmul.mubr.bf16.gmra.mrb[0].mxu0 %v348
  %v410 = vpop.f32.mrb[0].mxu0
  %v411 = vadd.f32 0.0, %v410
  %v412 = vpop.f32.mrb[0].mxu0
  %v413 = vpop.f32.mrb[0].mxu0
  %v414 = vadd.f32 0.0, %v413
  %v415 = vpop.f32.mrb[0].mxu0
  %416 = vmatprep.mubr.bf16.mxu0 0
  %417 = vmatmul.mubr.bf16.gmra.mrb[0].mxu0 %v351
  %v418 = vpop.f32.mrb[0].mxu0
  %v419 = vadd.f32 0.0, %v418
  %v420 = vpop.f32.mrb[0].mxu0
  %v421 = vpop.f32.mrb[0].mxu0
  %v422 = vadd.f32 0.0, %v421
  %v423 = vpop.f32.mrb[0].mxu0
  %424 = vmatprep.mubr.bf16.mxu0 0
  %425 = vmatmul.mubr.bf16.gmra.mrb[0].mxu0 %v354
  %v426 = vpop.f32.mrb[0].mxu0
  %v427 = vadd.f32 0.0, %v426
  %v428 = vpop.f32.mrb[0].mxu0
  %v429 = vpop.f32.mrb[0].mxu0
  %v430 = vadd.f32 0.0, %v429
  %v431 = vpop.f32.mrb[0].mxu0
  %432 = vmatprep.mubr.bf16.mxu0 0
  %433 = vmatmul.mubr.bf16.gmra.mrb[0].mxu0 %v357
  %v434 = vpop.f32.mrb[0].mxu0
  %v435 = vadd.f32 0.0, %v434
  %v436 = vpop.f32.mrb[0].mxu0
  %v437 = vpop.f32.mrb[0].mxu0
  %v438 = vadd.f32 0.0, %v437
  %v439 = vpop.f32.mrb[0].mxu0
  %440 = vmatprep.mubr.bf16.mxu0 0
  %441 = vmatmul.mubr.bf16.gmra.mrb[0].mxu0 %v360
  %v442 = vpop.f32.mrb[0].mxu0
  %v443 = vadd.f32 0.0, %v442
  %v444 = vpop.f32.mrb[0].mxu0
  %v445 = vpop.f32.mrb[0].mxu0
  %v446 = vadd.f32 0.0, %v445
  %v447 = vpop.f32.mrb[0].mxu0
  %448 = vmatprep.mubr.bf16.mxu0 0
  %449 = vmatmul.mubr.bf16.gmra.mrb[0].mxu0 %v363
  %v450 = vpop.f32.mrb[0].mxu0
  %v451 = vadd.f32 0.0, %v450
  %v452 = vpop.f32.mrb[0].mxu0
  %v453 = vpop.f32.mrb[0].mxu0
  %v454 = vadd.f32 0.0, %v453
  %v455 = vpop.f32.mrb[0].mxu0
  %456 = vmatprep.mubr.bf16.mxu0 0
  %457 = vmatmul.mubr.bf16.gmra.mrb[0].mxu0 %v366
  %v458 = vpop.f32.mrb[0].mxu0
  %v459 = vadd.f32 0.0, %v458
  %v460 = vpop.f32.mrb[0].mxu0
  %v461 = vpop.f32.mrb[0].mxu0
  %v462 = vadd.f32 0.0, %v461
  %v463 = vpop.f32.mrb[0].mxu0
  %464 = vdwg.mxu0
  %v465 = vadd.f32 %v403, %v406
  %v466 = vadd.f32 %v465, %v411
  %v467 = vadd.f32 %v466, %v414
  %v468 = vadd.f32 %v467, %v419
  %v469 = vadd.f32 %v468, %v422
  %v470 = vadd.f32 %v469, %v427
  %v471 = vadd.f32 %v470, %v430
  %v472 = vadd.f32 %v471, %v435
  %v473 = vadd.f32 %v472, %v438
  %v474 = vadd.f32 %v473, %v443
  %v475 = vadd.f32 %v474, %v446
  %v476 = vadd.f32 %v475, %v451
  %v477 = vadd.f32 %v476, %v454
  %v478 = vadd.f32 %v477, %v459
  %v479 = vadd.f32 %v478, %v462
  %v480 = vrot.slane %v479, 4
  %v481 = vadd.f32 %v479, %v480
  %v482 = vrot.slane %v481, 2
  %v483 = vadd.f32 %v481, %v482
  %v484 = vrot.slane %v483, 1
  %v485 = vadd.f32 %v483, %v484
  %v486 = vmul.f32 %v485, %v200
  %v487 = vmul.f32 %v403, %v403
  %v488 = vmul.f32 %v406, %v406
  %v489 = vmul.f32 %v411, %v411
  %v490 = vmul.f32 %v414, %v414
  %v491 = vmul.f32 %v419, %v419
  %v492 = vmul.f32 %v422, %v422
  %v493 = vmul.f32 %v427, %v427
  %v494 = vmul.f32 %v430, %v430
  %v495 = vmul.f32 %v435, %v435
  %v496 = vmul.f32 %v438, %v438
  %v497 = vmul.f32 %v443, %v443
  %v498 = vmul.f32 %v446, %v446
  %v499 = vmul.f32 %v451, %v451
  %v500 = vmul.f32 %v454, %v454
  %v501 = vmul.f32 %v459, %v459
  %v502 = vmul.f32 %v462, %v462
  %v503 = vadd.f32 %v487, %v488
  %v504 = vadd.f32 %v503, %v489
  %v505 = vadd.f32 %v504, %v490
  %v506 = vadd.f32 %v505, %v491
  %v507 = vadd.f32 %v506, %v492
  %v508 = vadd.f32 %v507, %v493
  %v509 = vadd.f32 %v508, %v494
  %v510 = vadd.f32 %v509, %v495
  %v511 = vadd.f32 %v510, %v496
  %v512 = vadd.f32 %v511, %v497
  %v513 = vadd.f32 %v512, %v498
  %v514 = vadd.f32 %v513, %v499
  %v515 = vadd.f32 %v514, %v500
  %v516 = vadd.f32 %v515, %v501
  %v517 = vadd.f32 %v516, %v502
  %v518 = vrot.slane %v517, 4
  %v519 = vadd.f32 %v517, %v518
  %v520 = vrot.slane %v519, 2
  %v521 = vadd.f32 %v519, %v520
  %v522 = vrot.slane %v521, 1
  %v523 = vadd.f32 %v521, %v522
  %v524 = vmul.f32 %v523, %v200
  %v525 = vmul.f32 %v486, %v486
  %v526 = vsub.f32 %v524, %v525
  %v527 = vadd.f32 %v526, 1e-05
  %v528 = vrsqrt.pop %v527
  %v529 = vmul.f32 %v322, %v528
  %v530 = vsub.f32 %v403, %v486
  %v531 = vsub.f32 %v406, %v486
  %v532 = vsub.f32 %v411, %v486
  %v533 = vsub.f32 %v414, %v486
  %v534 = vsub.f32 %v419, %v486
  %v535 = vsub.f32 %v422, %v486
  %v536 = vsub.f32 %v427, %v486
  %v537 = vsub.f32 %v430, %v486
  %v538 = vsub.f32 %v435, %v486
  %v539 = vsub.f32 %v438, %v486
  %v540 = vsub.f32 %v443, %v486
  %v541 = vsub.f32 %v446, %v486
  %v542 = vsub.f32 %v451, %v486
  %v543 = vsub.f32 %v454, %v486
  %v544 = vsub.f32 %v459, %v486
  %v545 = vsub.f32 %v462, %v486
  %v546 = vlaneseq
  %v547 = vshrl.u32 %v546, 7
  %v548 = vsub.s32 0, %v547
  %v549 = vrot.slane %v529, %v548
  %v550 = vmul.f32 %v530, %v549
  %v551 = vmul.f32 %v531, %v549
  %v552 = vmul.f32 %v532, %v549
  %v553 = vmul.f32 %v533, %v549
  %v554 = vmul.f32 %v534, %v549
  %v555 = vmul.f32 %v535, %v549
  %v556 = vmul.f32 %v536, %v549
  %v557 = vmul.f32 %v537, %v549
  %v558 = vmul.f32 %v538, %v549
  %v559 = vmul.f32 %v539, %v549
  %v560 = vmul.f32 %v540, %v549
  %v561 = vmul.f32 %v541, %v549
  %v562 = vmul.f32 %v542, %v549
  %v563 = vmul.f32 %v543, %v549
  %v564 = vmul.f32 %v544, %v549
  %v565 = vmul.f32 %v545, %v549
  %v566 = vlaneseq
  %v567 = vshrl.u32 %v566, 7
  %v568 = vsub.s32 0, %v567
  %v569 = vrot.slane %v323, %v568
  %v570 = vadd.f32 %v550, %v569
  %v571 = vadd.f32 %v551, %v569
  %v572 = vadd.f32 %v552, %v569
  %v573 = vadd.f32 %v553, %v569
  %v574 = vadd.f32 %v554, %v569
  %v575 = vadd.f32 %v555, %v569
  %v576 = vadd.f32 %v556, %v569
  %v577 = vadd.f32 %v557, %v569
  %v578 = vadd.f32 %v558, %v569
  %v579 = vadd.f32 %v559, %v569
  %v580 = vadd.f32 %v560, %v569
  %v581 = vadd.f32 %v561, %v569
  %v582 = vadd.f32 %v562, %v569
  %v583 = vadd.f32 %v563, %v569
  %v584 = vadd.f32 %v564, %v569
  %v585 = vadd.f32 %v565, %v569
  %v586 = vmax.f32 %v570, 0.0
  %v587 = vmax.f32 %v571, 0.0
  %v588 = vmax.f32 %v572, 0.0
  %v589 = vmax.f32 %v573, 0.0
  %v590 = vmax.f32 %v574, 0.0
  %v591 = vmax.f32 %v575, 0.0
  %v592 = vmax.f32 %v576, 0.0
  %v593 = vmax.f32 %v577, 0.0
  %v594 = vmax.f32 %v578, 0.0
  %v595 = vmax.f32 %v579, 0.0
  %v596 = vmax.f32 %v580, 0.0
  %v597 = vmax.f32 %v581, 0.0
  %v598 = vmax.f32 %v582, 0.0
  %v599 = vmax.f32 %v583, 0.0
  %v600 = vmax.f32 %v584, 0.0
  %v601 = vmax.f32 %v585, 0.0
  %s602 = scalar_lea.vmem %s1, 32
  %v603 = vld [vmem:[%s602] sm:$0xf]
  %v604 = vld [vmem:[%s602 + $0x4] sm:$0xf]
  %v605 = vld [vmem:[%s602 + $0x8] sm:$0xf]
  %v606 = vld [vmem:[%s602 + $0xc] sm:$0xf]
  %v607 = vld [vmem:[%s2 + $0x4] sm:$0x1]
  %v608 = vpack.c.bf16 %v587, %v586
  %v609 = vpack.c.bf16 %v589, %v588
  %v610 = vpack.c.bf16 %v591, %v590
  %v611 = vpack.c.bf16 %v593, %v592
  %v612 = vpack.c.bf16 %v595, %v594
  %v613 = vpack.c.bf16 %v597, %v596
  %v614 = vpack.c.bf16 %v599, %v598
  %v615 = vpack.c.bf16 %v601, %v600
  %v616 = vlaneseq
  %v617 = vshrl.u32 %v616, 7
  %v618 = vsub.s32 0, %v617
  %v619 = vrot.slane %v607, %v618
  %v624 = vunpack.c.l.b16 %v603
  %v625 = vunpack.c.l.b16 %v604
  %v626 = vunpack.c.l.b16 %v605
  %v627 = vunpack.c.l.b16 %v606
  %v628 = vpack.c.b16 %v625, %v624
  %v629 = vpack.c.b16 %v627, %v626
  %v633 = vsel %vm57, %v608, 0
  %v636 = vsel %vm57, %v609, 0
  %v639 = vsel %vm57, %v610, 0
  %v642 = vsel %vm57, %v611, 0
  %v645 = vsel %vm57, %v612, 0
  %v648 = vsel %vm57, %v613, 0
  %v651 = vsel %vm57, %v614, 0
  %v654 = vsel %vm57, %v615, 0
  %656 = vmatprep.subr.bf16.mxu0 0
  %657 = vmatpush1.bf16.msra.mxu0 %v628
  %658 = vmatprep.subr.bf16.mxu0 0
  %659 = vmatpush1.bf16.msra.mxu0 %v629
  %660 = vmatprep.subr.bf16.mxu0 0
  %661 = vmatpush1.bf16.msra.mxu0 0
  %662 = vmatprep.subr.bf16.mxu0 0
  %663 = vmatpush1.bf16.msra.mxu0 0
  %664 = vmatprep.subr.bf16.mxu0 0
  %665 = vmatpush1.bf16.msra.mxu0 0
  %666 = vmatprep.subr.bf16.mxu0 0
  %667 = vmatpush1.bf16.msra.mxu0 0
  %668 = vmatprep.subr.bf16.mxu0 0
  %669 = vmatpush1.bf16.msra.mxu0 0
  %670 = vmatprep.subr.bf16.mxu0 0
  %671 = vmatpush1.bf16.msra.mxu0 0
  %672 = vmatprep.subr.bf16.mxu0 0
  %673 = vmatpush1.bf16.msra.mxu0 0
  %674 = vmatprep.subr.bf16.mxu0 0
  %675 = vmatpush1.bf16.msra.mxu0 0
  %676 = vmatprep.subr.bf16.mxu0 0
  %677 = vmatpush1.bf16.msra.mxu0 0
  %678 = vmatprep.subr.bf16.mxu0 0
  %679 = vmatpush1.bf16.msra.mxu0 0
  %680 = vmatprep.subr.bf16.mxu0 0
  %681 = vmatpush1.bf16.msra.mxu0 0
  %682 = vmatprep.subr.bf16.mxu0 0
  %683 = vmatpush1.bf16.msra.mxu0 0
  %684 = vmatprep.subr.bf16.mxu0 0
  %685 = vmatpush1.bf16.msra.mxu0 0
  %686 = vmatprep.subr.bf16.mxu0 0
  %687 = vmatpush1.bf16.msra.mxu0 0
  %688 = vmatprep.mubr.bf16.mxu0 0
  %689 = vmatmul.mubr.bf16.gmra.mrb[0].mxu0 %v633
  %v690 = vpop.f32.mrb[0].mxu0
  %v691 = vadd.f32 %v619, %v690
  %v692 = vpop.f32.mrb[0].mxu0
  %v693 = vpop.f32.mrb[0].mxu0
  %v694 = vadd.f32 %v619, %v693
  %v695 = vpop.f32.mrb[0].mxu0
  %696 = vmatprep.mubr.bf16.mxu0 0
  %697 = vmatmul.mubr.bf16.gmra.mrb[0].mxu0 %v636
  %v698 = vpop.f32.mrb[0].mxu0
  %v699 = vadd.f32 %v619, %v698
  %v700 = vpop.f32.mrb[0].mxu0
  %v701 = vpop.f32.mrb[0].mxu0
  %v702 = vadd.f32 %v619, %v701
  %v703 = vpop.f32.mrb[0].mxu0
  %704 = vmatprep.mubr.bf16.mxu0 0
  %705 = vmatmul.mubr.bf16.gmra.mrb[0].mxu0 %v639
  %v706 = vpop.f32.mrb[0].mxu0
  %v707 = vadd.f32 %v619, %v706
  %v708 = vpop.f32.mrb[0].mxu0
  %v709 = vpop.f32.mrb[0].mxu0
  %v710 = vadd.f32 %v619, %v709
  %v711 = vpop.f32.mrb[0].mxu0
  %712 = vmatprep.mubr.bf16.mxu0 0
  %713 = vmatmul.mubr.bf16.gmra.mrb[0].mxu0 %v642
  %v714 = vpop.f32.mrb[0].mxu0
  %v715 = vadd.f32 %v619, %v714
  %v716 = vpop.f32.mrb[0].mxu0
  %v717 = vpop.f32.mrb[0].mxu0
  %v718 = vadd.f32 %v619, %v717
  %v719 = vpop.f32.mrb[0].mxu0
  %720 = vmatprep.mubr.bf16.mxu0 0
  %721 = vmatmul.mubr.bf16.gmra.mrb[0].mxu0 %v645
  %v722 = vpop.f32.mrb[0].mxu0
  %v723 = vadd.f32 %v619, %v722
  %v724 = vpop.f32.mrb[0].mxu0
  %v725 = vpop.f32.mrb[0].mxu0
  %v726 = vadd.f32 %v619, %v725
  %v727 = vpop.f32.mrb[0].mxu0
  %728 = vmatprep.mubr.bf16.mxu0 0
  %729 = vmatmul.mubr.bf16.gmra.mrb[0].mxu0 %v648
  %v730 = vpop.f32.mrb[0].mxu0
  %v731 = vadd.f32 %v619, %v730
  %v732 = vpop.f32.mrb[0].mxu0
  %v733 = vpop.f32.mrb[0].mxu0
  %v734 = vadd.f32 %v619, %v733
  %v735 = vpop.f32.mrb[0].mxu0
  %736 = vmatprep.mubr.bf16.mxu0 0
  %737 = vmatmul.mubr.bf16.gmra.mrb[0].mxu0 %v651
  %v738 = vpop.f32.mrb[0].mxu0
  %v739 = vadd.f32 %v619, %v738
  %v740 = vpop.f32.mrb[0].mxu0
  %v741 = vpop.f32.mrb[0].mxu0
  %v742 = vadd.f32 %v619, %v741
  %v743 = vpop.f32.mrb[0].mxu0
  %744 = vmatprep.mubr.bf16.mxu0 0
  %745 = vmatmul.mubr.bf16.gmra.mrb[0].mxu0 %v654
  %v746 = vpop.f32.mrb[0].mxu0
  %v747 = vadd.f32 %v619, %v746
  %v748 = vpop.f32.mrb[0].mxu0
  %v749 = vpop.f32.mrb[0].mxu0
  %v750 = vadd.f32 %v619, %v749
  %v751 = vpop.f32.mrb[0].mxu0
  %752 = vdwg.mxu0
  %v753 = vxor.u32 %v691, 2147483648
  %v754 = vxor.u32 %v694, 2147483648
  %v755 = vxor.u32 %v699, 2147483648
  %v756 = vxor.u32 %v702, 2147483648
  %v757 = vxor.u32 %v707, 2147483648
  %v758 = vxor.u32 %v710, 2147483648
  %v759 = vxor.u32 %v715, 2147483648
  %v760 = vxor.u32 %v718, 2147483648
  %v761 = vxor.u32 %v723, 2147483648
  %v762 = vxor.u32 %v726, 2147483648
  %v763 = vxor.u32 %v731, 2147483648
  %v764 = vxor.u32 %v734, 2147483648
  %v765 = vxor.u32 %v739, 2147483648
  %v766 = vxor.u32 %v742, 2147483648
  %v767 = vxor.u32 %v747, 2147483648
  %v768 = vxor.u32 %v750, 2147483648
  %v769 = vmul.f32 %v753, 1.442695
  %v770 = vpow.pop %v769
  %v771 = vmul.f32 %v754, 1.442695
  %v772 = vpow.pop %v771
  %v773 = vmul.f32 %v755, 1.442695
  %v774 = vpow.pop %v773
  %v775 = vmul.f32 %v756, 1.442695
  %v776 = vpow.pop %v775
  %v777 = vmul.f32 %v757, 1.442695
  %v778 = vpow.pop %v777
  %v779 = vmul.f32 %v758, 1.442695
  %v780 = vpow.pop %v779
  %v781 = vmul.f32 %v759, 1.442695
  %v782 = vpow.pop %v781
  %v783 = vmul.f32 %v760, 1.442695
  %v784 = vpow.pop %v783
  %v785 = vmul.f32 %v761, 1.442695
  %v786 = vpow.pop %v785
  %v787 = vmul.f32 %v762, 1.442695
  %v788 = vpow.pop %v787
  %v789 = vmul.f32 %v763, 1.442695
  %v790 = vpow.pop %v789
  %v791 = vmul.f32 %v764, 1.442695
  %v792 = vpow.pop %v791
  %v793 = vmul.f32 %v765, 1.442695
  %v794 = vpow.pop %v793
  %v795 = vmul.f32 %v766, 1.442695
  %v796 = vpow.pop %v795
  %v797 = vmul.f32 %v767, 1.442695
  %v798 = vpow.pop %v797
  %v799 = vmul.f32 %v768, 1.442695
  %v800 = vpow.pop %v799
  %v801 = vadd.f32 %v770, 1.0
  %v802 = vadd.f32 %v772, 1.0
  %v803 = vadd.f32 %v774, 1.0
  %v804 = vadd.f32 %v776, 1.0
  %v805 = vadd.f32 %v778, 1.0
  %v806 = vadd.f32 %v780, 1.0
  %v807 = vadd.f32 %v782, 1.0
  %v808 = vadd.f32 %v784, 1.0
  %v809 = vadd.f32 %v786, 1.0
  %v810 = vadd.f32 %v788, 1.0
  %v811 = vadd.f32 %v790, 1.0
  %v812 = vadd.f32 %v792, 1.0
  %v813 = vadd.f32 %v794, 1.0
  %v814 = vadd.f32 %v796, 1.0
  %v815 = vadd.f32 %v798, 1.0
  %v816 = vadd.f32 %v800, 1.0
  %v817 = vrcp.pop %v801
  %v818 = vmul.f32 1.0, %v817
  %v819 = vrcp.pop %v802
  %v820 = vmul.f32 1.0, %v819
  %v821 = vrcp.pop %v803
  %v822 = vmul.f32 1.0, %v821
  %v823 = vrcp.pop %v804
  %v824 = vmul.f32 1.0, %v823
  %v825 = vrcp.pop %v805
  %v826 = vmul.f32 1.0, %v825
  %v827 = vrcp.pop %v806
  %v828 = vmul.f32 1.0, %v827
  %v829 = vrcp.pop %v807
  %v830 = vmul.f32 1.0, %v829
  %v831 = vrcp.pop %v808
  %v832 = vmul.f32 1.0, %v831
  %v833 = vrcp.pop %v809
  %v834 = vmul.f32 1.0, %v833
  %v835 = vrcp.pop %v810
  %v836 = vmul.f32 1.0, %v835
  %v837 = vrcp.pop %v811
  %v838 = vmul.f32 1.0, %v837
  %v839 = vrcp.pop %v812
  %v840 = vmul.f32 1.0, %v839
  %v841 = vrcp.pop %v813
  %v842 = vmul.f32 1.0, %v841
  %v843 = vrcp.pop %v814
  %v844 = vmul.f32 1.0, %v843
  %v845 = vrcp.pop %v815
  %v846 = vmul.f32 1.0, %v845
  %v847 = vrcp.pop %v816
  %v848 = vmul.f32 1.0, %v847
  %vm849 = vcmask 64512
  %850 = vst.msk [vmem:[%s3] sm:$0xff] %vm849, %v818
  %851 = vst.msk [vmem:[%s3 + $0x8] sm:$0xff] %vm849, %v820
  %852 = vst.msk [vmem:[%s3 + $0x10] sm:$0xff] %vm849, %v822
  %853 = vst.msk [vmem:[%s3 + $0x18] sm:$0xff] %vm849, %v824
  %854 = vst.msk [vmem:[%s3 + $0x20] sm:$0xff] %vm849, %v826
  %855 = vst.msk [vmem:[%s3 + $0x28] sm:$0xff] %vm849, %v828
  %856 = vst.msk [vmem:[%s3 + $0x30] sm:$0xff] %vm849, %v830
  %857 = vst.msk [vmem:[%s3 + $0x38] sm:$0xff] %vm849, %v832
  %858 = vst.msk [vmem:[%s3 + $0x40] sm:$0xff] %vm849, %v834
  %859 = vst.msk [vmem:[%s3 + $0x48] sm:$0xff] %vm849, %v836
  %860 = vst.msk [vmem:[%s3 + $0x50] sm:$0xff] %vm849, %v838
  %861 = vst.msk [vmem:[%s3 + $0x58] sm:$0xff] %vm849, %v840
  %862 = vst.msk [vmem:[%s3 + $0x60] sm:$0xff] %vm849, %v842
  %863 = vst.msk [vmem:[%s3 + $0x68] sm:$0xff] %vm849, %v844
  %864 = vst.msk [vmem:[%s3 + $0x70] sm:$0xff] %vm849, %v846
  %865 = vst.msk [vmem:[%s3 + $0x78] sm:$0xff] %vm849, %v848
  // Predicated region
  $region14: #{tpu_custom_call.1} parent=0 // pred_check
    _
  $region15: #{tpu_custom_call.1} parent=0 // pred_check_branch
    %867 = sbr.rel (0) target = $region17
  $region16: #{tpu_custom_call.1} parent=0 // pred_region
    _
  $region17: #{tpu_custom_call.1} parent=0 // pred_fallthru
    _
  // Predicated region
  $region18: #{tpu_custom_call.1} parent=0 // pred_check
    _
  $region19: #{tpu_custom_call.1} parent=0 // pred_check_branch
    %869 = sbr.rel (0) target = $region21
  $region20: #{tpu_custom_call.1} parent=0 // pred_region
    _
  $region21: #{tpu_custom_call.1} parent=0 // pred_fallthru
    _

</llo_original>
